<compile_context>
chip_gen: v6e
topology: v6e:2x2x1
jax: 0.10.0
libtpu: 0.0.40
codegen_flags: <defaults>
</compile_context>

<pallas_src>
import functools

import jax
import jax.numpy as jnp
from jax import lax
from jax.experimental import pallas as pl
from jax.experimental.pallas import tpu as pltpu


def _bottleneck_kernel(x_ref, w1_ref, b1_ref, w2_ref, b2_ref, w3_ref, b3_ref,
                       o_ref, *, H, W, has_res):
    P = H * W
    x_b = x_ref[...].astype(jnp.bfloat16)                              # (Cin, P)

    # ---- conv1 (1x1, BN scale folded into weight) + bias + ReLU ------------
    a1 = jnp.dot(w1_ref[...], x_b, preferred_element_type=jnp.float32)  # (Cb, P)
    a1 = jnp.maximum(a1 + b1_ref[...], 0.0)

    # ---- conv2 (3x3, pad=1, stride=1) as ONE deep-K matmul ------------------
    # Base validity masks from a (1, P) iota, built once.
    pos = lax.broadcasted_iota(jnp.int32, (1, P), 1)
    if (W & (W - 1)) == 0:                 # power-of-two W: shift/and only
        row = pos >> (W.bit_length() - 1)
        col = pos & (W - 1)
    else:
        row = pos // W
        col = pos % W
    not_top = row >= 1
    not_bot = row < (H - 1)
    not_left = col >= 1
    not_right = col < (W - 1)

    taps = []
    for dy in (-1, 0, 1):
        for dx in (-1, 0, 1):
            off = dy * W + dx              # shift in flattened spatial index
            t = a1 if off == 0 else jnp.roll(a1, -off, axis=1)
            m = None
            if dy < 0:
                m = not_top
            elif dy > 0:
                m = not_bot
            if dx < 0:
                m = not_left if m is None else (m & not_left)
            elif dx > 0:
                m = not_right if m is None else (m & not_right)
            if m is not None:
                t = jnp.where(m, t, 0.0)   # (1,P) mask broadcast over channels
            taps.append(t)
    stacked = jnp.concatenate(taps, axis=0).astype(jnp.bfloat16)        # (9*Cb, P)

    a2 = jnp.dot(w2_ref[...], stacked, preferred_element_type=jnp.float32)
    a2 = jnp.maximum(a2 + b2_ref[...], 0.0)                             # (Cb, P)

    # ---- conv3 (1x1) [+ fused 1x1 residual projection] + bias --------------
    if has_res:
        rhs = jnp.concatenate([a2.astype(jnp.bfloat16), x_b], axis=0)   # (Cb+Cin, P)
        out = jnp.dot(w3_ref[...], rhs, preferred_element_type=jnp.float32)
        out = out + b3_ref[...]
    else:
        out = jnp.dot(w3_ref[...], a2.astype(jnp.bfloat16),
                      preferred_element_type=jnp.float32)
        out = out + b3_ref[...] + x_ref[...].astype(jnp.float32)        # identity res

    o_ref[...] = jnp.maximum(out, 0.0).astype(o_ref.dtype)


def _fold_bn(gamma, beta, mean, var, eps=1e-5):
    scale = (gamma / jnp.sqrt(var + eps)).astype(jnp.float32)            # (C,)
    bias = (beta - mean * scale).astype(jnp.float32).reshape(-1, 1)      # (C,1)
    return scale, bias


def bottleneck_forward(x, params, *, stride=1):
    """Fused Pallas forward of Bottleneck. x: (N, Cin, H, W) NCHW (like PyTorch)."""
    assert stride == 1, "TODO(synk): stride != 1 not implemented"

    N, Cin, H, W = x.shape
    P = H * W

    w1 = params["w1"][:, :, 0, 0]                                        # (Cb, Cin)
    w3 = params["w3"][:, :, 0, 0]                                        # (Cout, Cb)
    Cb, Cout = w1.shape[0], w3.shape[0]

    s1, b1 = _fold_bn(params["g1"], params["b1"], params["m1"], params["v1"])
    s2, b2 = _fold_bn(params["g2"], params["b2"], params["m2"], params["v2"])
    s3, b3 = _fold_bn(params["g3"], params["b3"], params["m3"], params["v3"])

    # Fold BN scales into the conv weights (host-side, free) and cast to bf16.
    w1f = (s1[:, None] * w1).astype(jnp.bfloat16)                        # (Cb, Cin)
    # 3x3 weights (O,I,kh,kw) -> (O, (ky*3+kx)*Cb + i): tap t = (dy+1)*3+(dx+1)
    w2_tap = jnp.transpose(params["w2"], (0, 2, 3, 1)).reshape(Cb, 9 * Cb)
    w2f = (s2[:, None] * w2_tap).astype(jnp.bfloat16)                    # (Cb, 9*Cb)
    w3f = s3[:, None] * w3                                               # (Cout, Cb)

    has_res = "wr" in params
    if has_res:
        wr = params["wr"][:, :, 0, 0]                                    # (Cout, Cin)
        w3r = jnp.concatenate([w3f, wr], axis=1).astype(jnp.bfloat16)    # (Cout, Cb+Cin)
        b3r = b3 + params["br"].astype(jnp.float32).reshape(-1, 1)       # (Cout, 1)
    else:
        assert Cin == Cout, "identity residual requires in_channels == out_channels"
        w3r = w3f.astype(jnp.bfloat16)
        b3r = b3

    x2d = x.reshape(N, Cin, P)        # lane-dense flattened spatial axis (layout only)
    inputs = [x2d, w1f, b1, w2f, b2, w3r, b3r]

    def full(arr):
        zeros = (0,) * arr.ndim
        return pl.BlockSpec(arr.shape, lambda n, _z=zeros: _z)

    in_specs = [pl.BlockSpec((None, Cin, P), lambda n: (n, 0, 0))]
    in_specs += [full(a) for a in inputs[1:]]

    # Explicit VMEM budget: double-buffered x/out blocks + intermediates + weights.
    est = (2 * Cin * P * 4 + 2 * Cout * P * 4           # pipelined x / out blocks
           + Cb * P * 4                                  # a1
           + 9 * Cb * P * (4 + 2)                        # stacked taps f32 + bf16
           + Cb * P * 4                                  # a2
           + (Cb + Cin) * P * 2                          # fused conv3 rhs
           + Cout * P * 4)                               # pre-store f32 out
    est += 2 * (w1f.size + w2f.size + w3r.size) + 4 * (b1.size + b2.size + b3r.size)
    vmem_limit = int(min(64 << 20, max(est * 3 // 2, 32 << 20)))

    kernel = functools.partial(_bottleneck_kernel, H=H, W=W, has_res=has_res)

    out2d = pl.pallas_call(
        kernel,
        out_shape=jax.ShapeDtypeStruct((N, Cout, P), x.dtype),
        grid=(N,),
        in_specs=in_specs,
        out_specs=pl.BlockSpec((None, Cout, P), lambda n: (n, 0, 0)),
        compiler_params=pltpu.CompilerParams(
            dimension_semantics=("parallel",),
            vmem_limit_bytes=vmem_limit),
    )(*inputs)

    return out2d.reshape(N, Cout, H, W)


def bottleneck_reference(x, params, *, stride=1, eps=1e-5):
    """Pure-JAX reference (eval-mode BatchNorm), matches the PyTorch forward."""
    def conv(inp, w, stride=1, padding=0, bias=None):
        out = lax.conv_general_dilated(
            inp, w, (stride, stride), [(padding, padding), (padding, padding)],
            dimension_numbers=("NCHW", "OIHW", "NCHW"))
        if bias is not None:
            out = out + bias[None, :, None, None]
        return out

    def bn(inp, g, b, m, v):
        scale = (g / jnp.sqrt(v + eps))[None, :, None, None]
        return (inp - m[None, :, None, None]) * scale + b[None, :, None, None]

    relu = lambda t: jnp.maximum(t, 0.0)
    out = relu(bn(conv(x, params["w1"]),
                  params["g1"], params["b1"], params["m1"], params["v1"]))
    out = relu(bn(conv(out, params["w2"], stride=stride, padding=1),
                  params["g2"], params["b2"], params["m2"], params["v2"]))
    out = bn(conv(out, params["w3"]),
             params["g3"], params["b3"], params["m3"], params["v3"])
    residual = x
    if "wr" in params:
        residual = conv(x, params["wr"], stride=stride, bias=params["br"])
    return relu(out + residual)


def _make_params(key, cin, cout, ratio=4):
    cb = cout // ratio
    ks = jax.random.split(key, 18)
    p = {
        "w1": 0.2 * jax.random.normal(ks[0], (cb, cin, 1, 1), jnp.float32),
        "w2": 0.2 * jax.random.normal(ks[1], (cb, cb, 3, 3), jnp.float32),
        "w3": 0.2 * jax.random.normal(ks[2], (cout, cb, 1, 1), jnp.float32),
        "g1": 1.0 + 0.1 * jax.random.normal(ks[5], (cb,), jnp.float32),
        "b1": 0.1 * jax.random.normal(ks[6], (cb,), jnp.float32),
        "m1": 0.1 * jax.random.normal(ks[7], (cb,), jnp.float32),
        "v1": jax.random.uniform(ks[8], (cb,), jnp.float32, 0.5, 1.5),
        "g2": 1.0 + 0.1 * jax.random.normal(ks[9], (cb,), jnp.float32),
        "b2": 0.1 * jax.random.normal(ks[10], (cb,), jnp.float32),
        "m2": 0.1 * jax.random.normal(ks[11], (cb,), jnp.float32),
        "v2": jax.random.uniform(ks[12], (cb,), jnp.float32, 0.5, 1.5),
        "g3": 1.0 + 0.1 * jax.random.normal(ks[13], (cout,), jnp.float32),
        "b3": 0.1 * jax.random.normal(ks[14], (cout,), jnp.float32),
        "m3": 0.1 * jax.random.normal(ks[15], (cout,), jnp.float32),
        "v3": jax.random.uniform(ks[16], (cout,), jnp.float32, 0.5, 1.5),
    }
    if cin != cout:   # residual projection conv (1x1, bias=True), like the module
        p["wr"] = 0.2 * jax.random.normal(ks[3], (cout, cin, 1, 1), jnp.float32)
        p["br"] = 0.1 * jax.random.normal(ks[4], (cout,), jnp.float32)
    return p


def _check(x, params):
    out = jax.block_until_ready(bottleneck_forward(x, params))
    ref = bottleneck_reference(x, params)
    assert out.shape == ref.shape and out.dtype == x.dtype
    ok = bool(jnp.allclose(out, ref, rtol=2e-2, atol=2e-2))
    assert ok, "max abs err: %f" % float(jnp.max(jnp.abs(out - ref)))


if __name__ == "__main__":
    key = jax.random.PRNGKey(0)
    k_p1, k_x1, k_p2, k_x2 = jax.random.split(key, 4)

    # Config 1: projection residual (in_channels != out_channels).
    N, Cin, Cout, H, W = 2, 4, 16, 16, 16
    params1 = _make_params(k_p1, Cin, Cout)
    x1 = jax.random.normal(k_x1, (N, Cin, H, W), jnp.float32)
    _check(x1, params1)

    # Config 2: identity residual (in_channels == out_channels).
    params2 = _make_params(k_p2, Cout, Cout)
    x2 = jax.random.normal(k_x2, (N, Cout, H, W), jnp.float32)
    _check(x2, params2)

    print("KERNEL_OK")
</pallas_src>

<mosaic_0001>
module attributes {stable_mosaic.version = 11 : i64} {
  func.func @_bottleneck_kernel(%arg0: i32, %arg1: memref<1x4x256xf32, #tpu.memory_space<vmem>>, %arg2: memref<4x4xbf16, #tpu.memory_space<vmem>>, %arg3: memref<4x1xf32, #tpu.memory_space<vmem>>, %arg4: memref<4x36xbf16, #tpu.memory_space<vmem>>, %arg5: memref<4x1xf32, #tpu.memory_space<vmem>>, %arg6: memref<16x8xbf16, #tpu.memory_space<vmem>>, %arg7: memref<16x1xf32, #tpu.memory_space<vmem>>, %arg8: memref<1x16x256xf32, #tpu.memory_space<vmem>>) attributes {dimension_semantics = [#tpu.dimension_semantics<parallel>], iteration_bounds = array<i64: 2>, scalar_prefetch = 0 : i64, scratch_operands = 0 : i64, tpu.core_type = #tpu.core_type<tc>, window_params = [{transform_indices = @transform_0, window_bounds = array<i64: 1, 4, 256>}, {pipeline_mode = #tpu.pipeline_mode<synchronous>, transform_indices = @transform_1, window_bounds = array<i64: 4, 4>}, {pipeline_mode = #tpu.pipeline_mode<synchronous>, transform_indices = @transform_2, window_bounds = array<i64: 4, 1>}, {pipeline_mode = #tpu.pipeline_mode<synchronous>, transform_indices = @transform_3, window_bounds = array<i64: 4, 36>}, {pipeline_mode = #tpu.pipeline_mode<synchronous>, transform_indices = @transform_4, window_bounds = array<i64: 4, 1>}, {pipeline_mode = #tpu.pipeline_mode<synchronous>, transform_indices = @transform_5, window_bounds = array<i64: 16, 8>}, {pipeline_mode = #tpu.pipeline_mode<synchronous>, transform_indices = @transform_6, window_bounds = array<i64: 16, 1>}, {transform_indices = @transform_7, window_bounds = array<i64: 1, 16, 256>}]} {
    %c0 = arith.constant 0 : index
    %c0_0 = arith.constant 0 : index
    %c0_1 = arith.constant 0 : index
    %0 = vector.load %arg1[%c0, %c0_0, %c0_1] : memref<1x4x256xf32, #tpu.memory_space<vmem>>, vector<1x4x256xf32>
    %1 = vector.shape_cast %0 : vector<1x4x256xf32> to vector<4x256xf32>
    %2 = arith.truncf %1 : vector<4x256xf32> to vector<4x256xbf16>
    %c0_2 = arith.constant 0 : index
    %c0_3 = arith.constant 0 : index
    %3 = vector.load %arg2[%c0_2, %c0_3] : memref<4x4xbf16, #tpu.memory_space<vmem>>, vector<4x4xbf16>
    %cst = arith.constant dense<0.000000e+00> : vector<4x256xf32>
    %4 = tpu.matmul %3, %2, %cst {dimension_numbers = #tpu.dot_dimension_numbers<[1], [0], [0], [1], [0, 0, 1, 1], [], []>} : vector<4x4xbf16>, vector<4x256xbf16>, vector<4x256xf32> -> vector<4x256xf32>
    %c0_4 = arith.constant 0 : index
    %c0_5 = arith.constant 0 : index
    %5 = vector.load %arg3[%c0_4, %c0_5] : memref<4x1xf32, #tpu.memory_space<vmem>>, vector<4x1xf32>
    %6 = vector.broadcast %5 : vector<4x1xf32> to vector<4x256xf32>
    %7 = arith.addf %4, %6 : vector<4x256xf32>
    %cst_6 = arith.constant 0.000000e+00 : f32
    %8 = vector.broadcast %cst_6 : f32 to vector<4x256xf32>
    %9 = arith.maximumf %7, %8 : vector<4x256xf32>
    %10 = tpu.iota {dimensions = array<i32: 1>} : vector<1x256xi32>
    %c4_i32 = arith.constant 4 : i32
    %11 = vector.broadcast %c4_i32 : i32 to vector<1x256xi32>
    %12 = arith.shrsi %10, %11 : vector<1x256xi32>
    %c15_i32 = arith.constant 15 : i32
    %13 = vector.broadcast %c15_i32 : i32 to vector<1x256xi32>
    %14 = arith.andi %10, %13 : vector<1x256xi32>
    %c1_i32 = arith.constant 1 : i32
    %15 = vector.broadcast %c1_i32 : i32 to vector<1x256xi32>
    %16 = arith.cmpi sge, %12, %15 : vector<1x256xi32>
    %c15_i32_7 = arith.constant 15 : i32
    %17 = vector.broadcast %c15_i32_7 : i32 to vector<1x256xi32>
    %18 = arith.cmpi slt, %12, %17 : vector<1x256xi32>
    %c1_i32_8 = arith.constant 1 : i32
    %19 = vector.broadcast %c1_i32_8 : i32 to vector<1x256xi32>
    %20 = arith.cmpi sge, %14, %19 : vector<1x256xi32>
    %c15_i32_9 = arith.constant 15 : i32
    %21 = vector.broadcast %c15_i32_9 : i32 to vector<1x256xi32>
    %22 = arith.cmpi slt, %14, %21 : vector<1x256xi32>
    %23 = vector.extract_strided_slice %9 {offsets = [0, 239], sizes = [4, 17], strides = [1, 1]} : vector<4x256xf32> to vector<4x17xf32>
    %24 = vector.extract_strided_slice %9 {offsets = [0, 0], sizes = [4, 239], strides = [1, 1]} : vector<4x256xf32> to vector<4x239xf32>
    %25 = tpu.concatenate %23, %24 in 1 : vector<4x17xf32>, vector<4x239xf32> -> vector<4x256xf32>
    %26 = arith.andi %16, %20 : vector<1x256xi1>
    %cst_10 = arith.constant 0.000000e+00 : f32
    %27 = vector.shape_cast %26 : vector<1x256xi1> to vector<1x256xi1>
    %28 = vector.broadcast %27 : vector<1x256xi1> to vector<4x256xi1>
    %29 = vector.broadcast %cst_10 : f32 to vector<4x256xf32>
    %30 = arith.select %28, %25, %29 : vector<4x256xi1>, vector<4x256xf32>
    %31 = vector.extract_strided_slice %9 {offsets = [0, 240], sizes = [4, 16], strides = [1, 1]} : vector<4x256xf32> to vector<4x16xf32>
    %32 = vector.extract_strided_slice %9 {offsets = [0, 0], sizes = [4, 240], strides = [1, 1]} : vector<4x256xf32> to vector<4x240xf32>
    %33 = tpu.concatenate %31, %32 in 1 : vector<4x16xf32>, vector<4x240xf32> -> vector<4x256xf32>
    %cst_11 = arith.constant 0.000000e+00 : f32
    %34 = vector.shape_cast %16 : vector<1x256xi1> to vector<1x256xi1>
    %35 = vector.broadcast %34 : vector<1x256xi1> to vector<4x256xi1>
    %36 = vector.broadcast %cst_11 : f32 to vector<4x256xf32>
    %37 = arith.select %35, %33, %36 : vector<4x256xi1>, vector<4x256xf32>
    %38 = vector.extract_strided_slice %9 {offsets = [0, 241], sizes = [4, 15], strides = [1, 1]} : vector<4x256xf32> to vector<4x15xf32>
    %39 = vector.extract_strided_slice %9 {offsets = [0, 0], sizes = [4, 241], strides = [1, 1]} : vector<4x256xf32> to vector<4x241xf32>
    %40 = tpu.concatenate %38, %39 in 1 : vector<4x15xf32>, vector<4x241xf32> -> vector<4x256xf32>
    %41 = arith.andi %16, %22 : vector<1x256xi1>
    %cst_12 = arith.constant 0.000000e+00 : f32
    %42 = vector.shape_cast %41 : vector<1x256xi1> to vector<1x256xi1>
    %43 = vector.broadcast %42 : vector<1x256xi1> to vector<4x256xi1>
    %44 = vector.broadcast %cst_12 : f32 to vector<4x256xf32>
    %45 = arith.select %43, %40, %44 : vector<4x256xi1>, vector<4x256xf32>
    %46 = vector.extract_strided_slice %9 {offsets = [0, 255], sizes = [4, 1], strides = [1, 1]} : vector<4x256xf32> to vector<4x1xf32>
    %47 = vector.extract_strided_slice %9 {offsets = [0, 0], sizes = [4, 255], strides = [1, 1]} : vector<4x256xf32> to vector<4x255xf32>
    %48 = tpu.concatenate %46, %47 in 1 : vector<4x1xf32>, vector<4x255xf32> -> vector<4x256xf32>
    %cst_13 = arith.constant 0.000000e+00 : f32
    %49 = vector.shape_cast %20 : vector<1x256xi1> to vector<1x256xi1>
    %50 = vector.broadcast %49 : vector<1x256xi1> to vector<4x256xi1>
    %51 = vector.broadcast %cst_13 : f32 to vector<4x256xf32>
    %52 = arith.select %50, %48, %51 : vector<4x256xi1>, vector<4x256xf32>
    %53 = vector.extract_strided_slice %9 {offsets = [0, 1], sizes = [4, 255], strides = [1, 1]} : vector<4x256xf32> to vector<4x255xf32>
    %54 = vector.extract_strided_slice %9 {offsets = [0, 0], sizes = [4, 1], strides = [1, 1]} : vector<4x256xf32> to vector<4x1xf32>
    %55 = tpu.concatenate %53, %54 in 1 : vector<4x255xf32>, vector<4x1xf32> -> vector<4x256xf32>
    %cst_14 = arith.constant 0.000000e+00 : f32
    %56 = vector.shape_cast %22 : vector<1x256xi1> to vector<1x256xi1>
    %57 = vector.broadcast %56 : vector<1x256xi1> to vector<4x256xi1>
    %58 = vector.broadcast %cst_14 : f32 to vector<4x256xf32>
    %59 = arith.select %57, %55, %58 : vector<4x256xi1>, vector<4x256xf32>
    %60 = vector.extract_strided_slice %9 {offsets = [0, 15], sizes = [4, 241], strides = [1, 1]} : vector<4x256xf32> to vector<4x241xf32>
    %61 = vector.extract_strided_slice %9 {offsets = [0, 0], sizes = [4, 15], strides = [1, 1]} : vector<4x256xf32> to vector<4x15xf32>
    %62 = tpu.concatenate %60, %61 in 1 : vector<4x241xf32>, vector<4x15xf32> -> vector<4x256xf32>
    %63 = arith.andi %18, %20 : vector<1x256xi1>
    %cst_15 = arith.constant 0.000000e+00 : f32
    %64 = vector.shape_cast %63 : vector<1x256xi1> to vector<1x256xi1>
    %65 = vector.broadcast %64 : vector<1x256xi1> to vector<4x256xi1>
    %66 = vector.broadcast %cst_15 : f32 to vector<4x256xf32>
    %67 = arith.select %65, %62, %66 : vector<4x256xi1>, vector<4x256xf32>
    %68 = vector.extract_strided_slice %9 {offsets = [0, 16], sizes = [4, 240], strides = [1, 1]} : vector<4x256xf32> to vector<4x240xf32>
    %69 = vector.extract_strided_slice %9 {offsets = [0, 0], sizes = [4, 16], strides = [1, 1]} : vector<4x256xf32> to vector<4x16xf32>
    %70 = tpu.concatenate %68, %69 in 1 : vector<4x240xf32>, vector<4x16xf32> -> vector<4x256xf32>
    %cst_16 = arith.constant 0.000000e+00 : f32
    %71 = vector.shape_cast %18 : vector<1x256xi1> to vector<1x256xi1>
    %72 = vector.broadcast %71 : vector<1x256xi1> to vector<4x256xi1>
    %73 = vector.broadcast %cst_16 : f32 to vector<4x256xf32>
    %74 = arith.select %72, %70, %73 : vector<4x256xi1>, vector<4x256xf32>
    %75 = vector.extract_strided_slice %9 {offsets = [0, 17], sizes = [4, 239], strides = [1, 1]} : vector<4x256xf32> to vector<4x239xf32>
    %76 = vector.extract_strided_slice %9 {offsets = [0, 0], sizes = [4, 17], strides = [1, 1]} : vector<4x256xf32> to vector<4x17xf32>
    %77 = tpu.concatenate %75, %76 in 1 : vector<4x239xf32>, vector<4x17xf32> -> vector<4x256xf32>
    %78 = arith.andi %18, %22 : vector<1x256xi1>
    %cst_17 = arith.constant 0.000000e+00 : f32
    %79 = vector.shape_cast %78 : vector<1x256xi1> to vector<1x256xi1>
    %80 = vector.broadcast %79 : vector<1x256xi1> to vector<4x256xi1>
    %81 = vector.broadcast %cst_17 : f32 to vector<4x256xf32>
    %82 = arith.select %80, %77, %81 : vector<4x256xi1>, vector<4x256xf32>
    %83 = tpu.concatenate %30, %37, %45, %52, %9, %59, %67, %74, %82 in 0 : vector<4x256xf32>, vector<4x256xf32>, vector<4x256xf32>, vector<4x256xf32>, vector<4x256xf32>, vector<4x256xf32>, vector<4x256xf32>, vector<4x256xf32>, vector<4x256xf32> -> vector<36x256xf32>
    %84 = arith.truncf %83 : vector<36x256xf32> to vector<36x256xbf16>
    %c0_18 = arith.constant 0 : index
    %c0_19 = arith.constant 0 : index
    %85 = vector.load %arg4[%c0_18, %c0_19] : memref<4x36xbf16, #tpu.memory_space<vmem>>, vector<4x36xbf16>
    %cst_20 = arith.constant dense<0.000000e+00> : vector<4x256xf32>
    %86 = tpu.matmul %85, %84, %cst_20 {dimension_numbers = #tpu.dot_dimension_numbers<[1], [0], [0], [1], [0, 0, 1, 1], [], []>} : vector<4x36xbf16>, vector<36x256xbf16>, vector<4x256xf32> -> vector<4x256xf32>
    %c0_21 = arith.constant 0 : index
    %c0_22 = arith.constant 0 : index
    %87 = vector.load %arg5[%c0_21, %c0_22] : memref<4x1xf32, #tpu.memory_space<vmem>>, vector<4x1xf32>
    %88 = vector.broadcast %87 : vector<4x1xf32> to vector<4x256xf32>
    %89 = arith.addf %86, %88 : vector<4x256xf32>
    %cst_23 = arith.constant 0.000000e+00 : f32
    %90 = vector.broadcast %cst_23 : f32 to vector<4x256xf32>
    %91 = arith.maximumf %89, %90 : vector<4x256xf32>
    %92 = arith.truncf %91 : vector<4x256xf32> to vector<4x256xbf16>
    %93 = tpu.concatenate %92, %2 in 0 : vector<4x256xbf16>, vector<4x256xbf16> -> vector<8x256xbf16>
    %c0_24 = arith.constant 0 : index
    %c0_25 = arith.constant 0 : index
    %94 = vector.load %arg6[%c0_24, %c0_25] : memref<16x8xbf16, #tpu.memory_space<vmem>>, vector<16x8xbf16>
    %cst_26 = arith.constant dense<0.000000e+00> : vector<16x256xf32>
    %95 = tpu.matmul %94, %93, %cst_26 {dimension_numbers = #tpu.dot_dimension_numbers<[1], [0], [0], [1], [0, 0, 1, 1], [], []>} : vector<16x8xbf16>, vector<8x256xbf16>, vector<16x256xf32> -> vector<16x256xf32>
    %c0_27 = arith.constant 0 : index
    %c0_28 = arith.constant 0 : index
    %96 = vector.load %arg7[%c0_27, %c0_28] : memref<16x1xf32, #tpu.memory_space<vmem>>, vector<16x1xf32>
    %97 = vector.broadcast %96 : vector<16x1xf32> to vector<16x256xf32>
    %98 = arith.addf %95, %97 : vector<16x256xf32>
    %cst_29 = arith.constant 0.000000e+00 : f32
    %99 = vector.broadcast %cst_29 : f32 to vector<16x256xf32>
    %100 = arith.maximumf %98, %99 : vector<16x256xf32>
    %c0_30 = arith.constant 0 : index
    %c0_31 = arith.constant 0 : index
    %c0_32 = arith.constant 0 : index
    %101 = vector.load %arg8[%c0_30, %c0_31, %c0_32] : memref<1x16x256xf32, #tpu.memory_space<vmem>>, vector<1x16x256xf32>
    %102 = vector.shape_cast %101 : vector<1x16x256xf32> to vector<16x256xf32>
    %103 = vector.shape_cast %100 : vector<16x256xf32> to vector<1x16x256xf32>
    tpu.vector_store %arg8[%c0_30, %c0_31, %c0_32], %103 {strides = array<i32>} : memref<1x16x256xf32, #tpu.memory_space<vmem>>, vector<1x16x256xf32>,
    return
  }
  func.func @transform_0(%arg0: i32) -> (i32, i32, i32) {
    %c0_i32 = arith.constant 0 : i32
    %c0_i32_0 = arith.constant 0 : i32
    %c0_i32_1 = arith.constant 0 : i32
    return %arg0, %c0_i32, %c0_i32_0 : i32, i32, i32
  }
  func.func @transform_1(%arg0: i32) -> (i32, i32) {
    %c0_i32 = arith.constant 0 : i32
    %c0_i32_0 = arith.constant 0 : i32
    %c0_i32_1 = arith.constant 0 : i32
    return %c0_i32, %c0_i32_0 : i32, i32
  }
  func.func @transform_2(%arg0: i32) -> (i32, i32) {
    %c0_i32 = arith.constant 0 : i32
    %c0_i32_0 = arith.constant 0 : i32
    %c0_i32_1 = arith.constant 0 : i32
    return %c0_i32, %c0_i32_0 : i32, i32
  }
  func.func @transform_3(%arg0: i32) -> (i32, i32) {
    %c0_i32 = arith.constant 0 : i32
    %c0_i32_0 = arith.constant 0 : i32
    %c0_i32_1 = arith.constant 0 : i32
    return %c0_i32, %c0_i32_0 : i32, i32
  }
  func.func @transform_4(%arg0: i32) -> (i32, i32) {
    %c0_i32 = arith.constant 0 : i32
    %c0_i32_0 = arith.constant 0 : i32
    %c0_i32_1 = arith.constant 0 : i32
    return %c0_i32, %c0_i32_0 : i32, i32
  }
  func.func @transform_5(%arg0: i32) -> (i32, i32) {
    %c0_i32 = arith.constant 0 : i32
    %c0_i32_0 = arith.constant 0 : i32
    %c0_i32_1 = arith.constant 0 : i32
    return %c0_i32, %c0_i32_0 : i32, i32
  }
  func.func @transform_6(%arg0: i32) -> (i32, i32) {
    %c0_i32 = arith.constant 0 : i32
    %c0_i32_0 = arith.constant 0 : i32
    %c0_i32_1 = arith.constant 0 : i32
    return %c0_i32, %c0_i32_0 : i32, i32
  }
  func.func @transform_7(%arg0: i32) -> (i32, i32, i32) {
    %c0_i32 = arith.constant 0 : i32
    %c0_i32_0 = arith.constant 0 : i32
    %c0_i32_1 = arith.constant 0 : i32
    return %arg0, %c0_i32, %c0_i32_0 : i32, i32, i32
  }
}

</mosaic_0001>

<llo_original>
// kernel: tpu_custom_call.1
$region0: #{tpu_custom_call.1}
  #allocation0 [shape = 'u32[]', space=smem, size = 0x4, offset = 0x4, fixed_abs, tag = 'smem constant byte address 0x4 - core index']
  #allocation1 [shape = 'u32[144,128]{1,0:T(1,128)}', space=vmem, size = 0x12000, scoped, tag = 'internal scratch']
  %s0 = inlined_call_operand.vmem [shape: f32[2,4,256], index: 0, kind: input, shape index: {}]
  %s1 = inlined_call_operand.vmem [shape: bf16[4,4], index: 1, kind: input, shape index: {}]
  %s2 = inlined_call_operand.vmem [shape: f32[4,1], index: 2, kind: input, shape index: {}]
  %s3 = inlined_call_operand.vmem [shape: bf16[4,36], index: 3, kind: input, shape index: {}]
  %s4 = inlined_call_operand.vmem [shape: f32[4,1], index: 4, kind: input, shape index: {}]
  %s5 = inlined_call_operand.vmem [shape: bf16[16,8], index: 5, kind: input, shape index: {}]
  %s6 = inlined_call_operand.vmem [shape: f32[16,1], index: 6, kind: input, shape index: {}]
  %s7 = inlined_call_operand.hbm [shape: f32[2,16,256], index: 7, kind: output, shape index: {}]
  %s8 = sld [smem:[#allocation0]]
  $region61: #{tpu_custom_call.1} parent=0
    _
  %s10 = ssub.s32 1, %s8
  %s11 = scalar_select 0, %s10, %s8
  $region1: #{tpu_custom_call.1} parent=0
    #allocation2 [shape = 'u8[32768]{0}', space=vmem, size = 0x8000, scoped, tag = 'output window, operand 0']
    #allocation3 [shape = 's32[2]{0}', space=sflag, size = 0x8, scoped, tag = 'scoped memory for tpu_custom_call.1']
    %12 = vsyncpa [#allocation3], 0
    %s13 = scalar_lea.sflag [#allocation3], 1
    %14 = vsyncpa %s13, 0
    loop: start=0, step=1, limit=4
    $region2: #{tpu_custom_call.1} parent=1 // loop_pre_header
      _
    $region3: #{tpu_custom_call.1} parent=1 // loop_header
      %s16 = sphi 0, %s20
      %p17 = scmp.ge.s32.totalorder %s16, 4
      %s26 = sphi 0, %s28
      %s29 = sphi 0, %s26
      %s30 = sphi 0, %s29
      %s46 = sphi 0, %s30
      %s50 = sphi 0, %s50
      %s52 = sphi 0, %s50
      %s53 = sphi 0, %s52
      %s67 = sphi 0, %s53
      %s71 = sphi 0, %s71
      %s73 = sphi 0, %s71
      %s74 = sphi 0, %s73
      %s88 = sphi 0, %s74
      %s92 = sphi 0, %s92
      %s94 = sphi 0, %s92
      %s95 = sphi 0, %s94
      %s109 = sphi 0, %s95
      %s113 = sphi 0, %s113
      %s115 = sphi 0, %s113
      %s116 = sphi 0, %s115
      %s130 = sphi 0, %s116
      %s134 = sphi 0, %s134
      %s136 = sphi 0, %s134
      %s137 = sphi 0, %s136
      %s151 = sphi 0, %s137
      %s155 = sphi 0, %s155
      %s157 = sphi 0, %s155
      %s158 = sphi 0, %s157
      %s172 = sphi 0, %s158
      %s178 = sphi 0, %s180
      %s181 = sphi 0, %s178
      %s182 = sphi 0, %s181
      %s198 = sphi 0, %s182
    $region4: #{tpu_custom_call.1} parent=1 // loop_header_branch
      %19 = sbr.rel (%p17) target = $region8
    $region5: #{tpu_custom_call.1} parent=1 // loop_body
      %s21 = ssub.s32 %s16, 1
      %s22 = ssub.s32 %s16, 2
      %s23 = sadd.s32 %s16, 1
      %s24 = ssub.s32 %s16, %s23
      %p25 = scmp.eq.s32.totalorder %s24, 0
      %s27 = sadd.s32 %s26, 1
      %s28 = scalar_select %p25, %s26, %s27
      %p31 = pneg %p25
      %p32 = scmp.eq.s32.totalorder %s16, 1
      %p33 = por %p31, %p32
      %p34 = scmp.ne.s32.totalorder %s26, %s29
      %p35 = scmp.eq.s32.totalorder %s16, 0
      %p36 = por %p34, %p35
      %p37 = scmp.ne.s32.totalorder %s26, %s29
      %p38 = scmp.eq.s32.totalorder %s21, 1
      %p39 = por %p37, %p38
      %p40 = scmp.ne.s32.totalorder %s29, %s30
      %p41 = scmp.eq.s32.totalorder %s21, 0
      %p42 = por %p40, %p41
      %p43 = scmp.ne.s32.totalorder %s29, %s30
      %p44 = scmp.eq.s32.totalorder %s22, 1
      %p45 = por %p43, %p44
      %p47 = scmp.ne.s32.totalorder %s30, %s46
      %p48 = scmp.eq.s32.totalorder %s22, 0
      %p49 = por %p47, %p48
      %s51 = sadd.s32 %s50, 1
      %p54 = scmp.eq.s32.totalorder %s16, 1
      %p55 = scmp.ne.s32.totalorder %s50, %s52
      %p56 = scmp.eq.s32.totalorder %s16, 0
      %p57 = por %p55, %p56
      %p58 = scmp.ne.s32.totalorder %s50, %s52
      %p59 = scmp.eq.s32.totalorder %s21, 1
      %p60 = por %p58, %p59
      %p61 = scmp.ne.s32.totalorder %s52, %s53
      %p62 = scmp.eq.s32.totalorder %s21, 0
      %p63 = por %p61, %p62
      %p64 = scmp.ne.s32.totalorder %s52, %s53
      %p65 = scmp.eq.s32.totalorder %s22, 1
      %p66 = por %p64, %p65
      %p68 = scmp.ne.s32.totalorder %s53, %s67
      %p69 = scmp.eq.s32.totalorder %s22, 0
      %p70 = por %p68, %p69
      %s72 = sadd.s32 %s71, 1
      %p75 = scmp.eq.s32.totalorder %s16, 1
      %p76 = scmp.ne.s32.totalorder %s71, %s73
      %p77 = scmp.eq.s32.totalorder %s16, 0
      %p78 = por %p76, %p77
      %p79 = scmp.ne.s32.totalorder %s71, %s73
      %p80 = scmp.eq.s32.totalorder %s21, 1
      %p81 = por %p79, %p80
      %p82 = scmp.ne.s32.totalorder %s73, %s74
      %p83 = scmp.eq.s32.totalorder %s21, 0
      %p84 = por %p82, %p83
      %p85 = scmp.ne.s32.totalorder %s73, %s74
      %p86 = scmp.eq.s32.totalorder %s22, 1
      %p87 = por %p85, %p86
      %p89 = scmp.ne.s32.totalorder %s74, %s88
      %p90 = scmp.eq.s32.totalorder %s22, 0
      %p91 = por %p89, %p90
      %s93 = sadd.s32 %s92, 1
      %p96 = scmp.eq.s32.totalorder %s16, 1
      %p97 = scmp.ne.s32.totalorder %s92, %s94
      %p98 = scmp.eq.s32.totalorder %s16, 0
      %p99 = por %p97, %p98
      %p100 = scmp.ne.s32.totalorder %s92, %s94
      %p101 = scmp.eq.s32.totalorder %s21, 1
      %p102 = por %p100, %p101
      %p103 = scmp.ne.s32.totalorder %s94, %s95
      %p104 = scmp.eq.s32.totalorder %s21, 0
      %p105 = por %p103, %p104
      %p106 = scmp.ne.s32.totalorder %s94, %s95
      %p107 = scmp.eq.s32.totalorder %s22, 1
      %p108 = por %p106, %p107
      %p110 = scmp.ne.s32.totalorder %s95, %s109
      %p111 = scmp.eq.s32.totalorder %s22, 0
      %p112 = por %p110, %p111
      %s114 = sadd.s32 %s113, 1
      %p117 = scmp.eq.s32.totalorder %s16, 1
      %p118 = scmp.ne.s32.totalorder %s113, %s115
      %p119 = scmp.eq.s32.totalorder %s16, 0
      %p120 = por %p118, %p119
      %p121 = scmp.ne.s32.totalorder %s113, %s115
      %p122 = scmp.eq.s32.totalorder %s21, 1
      %p123 = por %p121, %p122
      %p124 = scmp.ne.s32.totalorder %s115, %s116
      %p125 = scmp.eq.s32.totalorder %s21, 0
      %p126 = por %p124, %p125
      %p127 = scmp.ne.s32.totalorder %s115, %s116
      %p128 = scmp.eq.s32.totalorder %s22, 1
      %p129 = por %p127, %p128
      %p131 = scmp.ne.s32.totalorder %s116, %s130
      %p132 = scmp.eq.s32.totalorder %s22, 0
      %p133 = por %p131, %p132
      %s135 = sadd.s32 %s134, 1
      %p138 = scmp.eq.s32.totalorder %s16, 1
      %p139 = scmp.ne.s32.totalorder %s134, %s136
      %p140 = scmp.eq.s32.totalorder %s16, 0
      %p141 = por %p139, %p140
      %p142 = scmp.ne.s32.totalorder %s134, %s136
      %p143 = scmp.eq.s32.totalorder %s21, 1
      %p144 = por %p142, %p143
      %p145 = scmp.ne.s32.totalorder %s136, %s137
      %p146 = scmp.eq.s32.totalorder %s21, 0
      %p147 = por %p145, %p146
      %p148 = scmp.ne.s32.totalorder %s136, %s137
      %p149 = scmp.eq.s32.totalorder %s22, 1
      %p150 = por %p148, %p149
      %p152 = scmp.ne.s32.totalorder %s137, %s151
      %p153 = scmp.eq.s32.totalorder %s22, 0
      %p154 = por %p152, %p153
      %s156 = sadd.s32 %s155, 1
      %p159 = scmp.eq.s32.totalorder %s16, 1
      %p160 = scmp.ne.s32.totalorder %s155, %s157
      %p161 = scmp.eq.s32.totalorder %s16, 0
      %p162 = por %p160, %p161
      %p163 = scmp.ne.s32.totalorder %s155, %s157
      %p164 = scmp.eq.s32.totalorder %s21, 1
      %p165 = por %p163, %p164
      %p166 = scmp.ne.s32.totalorder %s157, %s158
      %p167 = scmp.eq.s32.totalorder %s21, 0
      %p168 = por %p166, %p167
      %p169 = scmp.ne.s32.totalorder %s157, %s158
      %p170 = scmp.eq.s32.totalorder %s22, 1
      %p171 = por %p169, %p170
      %p173 = scmp.ne.s32.totalorder %s158, %s172
      %p174 = scmp.eq.s32.totalorder %s22, 0
      %p175 = por %p173, %p174
      %s176 = ssub.s32 %s16, %s23
      %p177 = scmp.eq.s32.totalorder %s176, 0
      %s179 = sadd.s32 %s178, 1
      %s180 = scalar_select %p177, %s178, %s179
      %p183 = pneg %p177
      %p184 = scmp.eq.s32.totalorder %s16, 1
      %p185 = por %p183, %p184
      %p186 = scmp.ne.s32.totalorder %s178, %s181
      %p187 = scmp.eq.s32.totalorder %s16, 0
      %p188 = por %p186, %p187
      %p189 = scmp.ne.s32.totalorder %s178, %s181
      %p190 = scmp.eq.s32.totalorder %s21, 1
      %p191 = por %p189, %p190
      %p192 = scmp.ne.s32.totalorder %s181, %s182
      %p193 = scmp.eq.s32.totalorder %s21, 0
      %p194 = por %p192, %p193
      %p195 = scmp.ne.s32.totalorder %s181, %s182
      %p196 = scmp.eq.s32.totalorder %s22, 1
      %p197 = por %p195, %p196
      %p199 = scmp.ne.s32.totalorder %s182, %s198
      %p200 = scmp.eq.s32.totalorder %s22, 0
      %p201 = por %p199, %p200
      %p202 = scmp.le.s32.totalorder 1, %s16
      %p203 = scmp.lt.s32.totalorder %s16, 3
      %p204 = pnand %p202, %p203
      %p205 = pneg %p204
      // Predicated region
      $region9: #{tpu_custom_call.1} parent=5 // pred_check
        _
      $region10: #{tpu_custom_call.1} parent=5 // pred_check_branch
        %207 = sbr.rel (%p204) target = $region12
      $region11: #{tpu_custom_call.1} parent=5 // pred_region
        %s208 = ssub.s32 %s16, 1
        // Predicated region
        $region13: #{tpu_custom_call.1} parent=11 // pred_check
          %p209 = pneg %p63
        $region14: #{tpu_custom_call.1} parent=11 // pred_check_branch
          %211 = sbr.rel (%p209) target = $region16
        $region15: #{tpu_custom_call.1} parent=11 // pred_region
          _
        $region16: #{tpu_custom_call.1} parent=11 // pred_fallthru
          _
        // Predicated region
        $region17: #{tpu_custom_call.1} parent=11 // pred_check
          %p212 = pneg %p84
        $region18: #{tpu_custom_call.1} parent=11 // pred_check_branch
          %214 = sbr.rel (%p212) target = $region20
        $region19: #{tpu_custom_call.1} parent=11 // pred_region
          _
        $region20: #{tpu_custom_call.1} parent=11 // pred_fallthru
          _
        // Predicated region
        $region21: #{tpu_custom_call.1} parent=11 // pred_check
          %p215 = pneg %p105
        $region22: #{tpu_custom_call.1} parent=11 // pred_check_branch
          %217 = sbr.rel (%p215) target = $region24
        $region23: #{tpu_custom_call.1} parent=11 // pred_region
          _
        $region24: #{tpu_custom_call.1} parent=11 // pred_fallthru
          _
        // Predicated region
        $region25: #{tpu_custom_call.1} parent=11 // pred_check
          %p218 = pneg %p126
        $region26: #{tpu_custom_call.1} parent=11 // pred_check_branch
          %220 = sbr.rel (%p218) target = $region28
        $region27: #{tpu_custom_call.1} parent=11 // pred_region
          _
        $region28: #{tpu_custom_call.1} parent=11 // pred_fallthru
          _
        // Predicated region
        $region29: #{tpu_custom_call.1} parent=11 // pred_check
          %p221 = pneg %p147
        $region30: #{tpu_custom_call.1} parent=11 // pred_check_branch
          %223 = sbr.rel (%p221) target = $region32
        $region31: #{tpu_custom_call.1} parent=11 // pred_region
          _
        $region32: #{tpu_custom_call.1} parent=11 // pred_fallthru
          _
        // Predicated region
        $region33: #{tpu_custom_call.1} parent=11 // pred_check
          %p224 = pneg %p168
        $region34: #{tpu_custom_call.1} parent=11 // pred_check_branch
          %226 = sbr.rel (%p224) target = $region36
        $region35: #{tpu_custom_call.1} parent=11 // pred_region
          _
        $region36: #{tpu_custom_call.1} parent=11 // pred_fallthru
          _
      $region12: #{tpu_custom_call.1} parent=5 // pred_fallthru
        _
      %p227 = scmp.lt.s32.totalorder %s16, 2
      // Predicated region
      $region37: #{tpu_custom_call.1} parent=5 // pred_check
        %p228 = pneg %p227
      $region38: #{tpu_custom_call.1} parent=5 // pred_check_branch
        %230 = sbr.rel (%p228) target = $region40
      $region39: #{tpu_custom_call.1} parent=5 // pred_region
        // Predicated region
        $region41: #{tpu_custom_call.1} parent=39 // pred_check
          %p231 = pneg %p36
        $region42: #{tpu_custom_call.1} parent=39 // pred_check_branch
          %233 = sbr.rel (%p231) target = $region44
        $region43: #{tpu_custom_call.1} parent=39 // pred_region
          %p234 = scmp.lt.s32.totalorder %s16, 1
          %s235 = scalar_select %p234, %s16, 1
          %s236 = smul.addr %s235, 2
          %s237 = smul.addr %s236, 4
          %s238 = scalar_lea.vmem %s0, %s237
        $region44: #{tpu_custom_call.1} parent=39 // pred_fallthru
          _
      $region40: #{tpu_custom_call.1} parent=5 // pred_fallthru
        _
      %p239 = scmp.le.s32.totalorder 1, %s16
      %p240 = scmp.lt.s32.totalorder %s16, 3
      %p241 = pnand %p239, %p240
      %p242 = pneg %p241
      // Predicated region
      $region45: #{tpu_custom_call.1} parent=5 // pred_check
        _
      $region46: #{tpu_custom_call.1} parent=5 // pred_check_branch
        %244 = sbr.rel (%p241) target = $region48
      $region47: #{tpu_custom_call.1} parent=5 // pred_region
        %s245 = ssub.s32 %s16, 1
        %p246 = scmp.lt.s32.totalorder %s21, 1
        %s247 = scalar_select %p246, %s21, 1
        %s248 = smul.addr %s247, 2
        %s249 = smul.addr %s248, 4
        %s250 = scalar_lea.vmem %s0, %s249
        %p251 = pneg %p42
        %p252 = pneg %p39
        %p253 = pneg %p63
        %p254 = pneg %p60
        %p255 = pneg %p84
        %p256 = pneg %p81
        %p257 = pneg %p105
        %p258 = pneg %p102
        %p259 = pneg %p126
        %p260 = pneg %p123
        %p261 = pneg %p147
        %p262 = pneg %p144
        %p263 = pneg %p168
        %p264 = pneg %p165
        %p265 = pneg %p194
        %p266 = pneg %p191
        %s267 = sand.u32 %s181, 1
        %s268 = scalar_lea.sflag [#allocation3], %s267
        %s269 = sand.u32 %s181, 1
        %s270 = smul.addr %s269, 32
        %s271 = scalar_lea.vmem [#allocation2], %s270
        %p272 = scmp.lt.s32.totalorder %s21, 1
        %s273 = scalar_select %p272, %s21, 1
        %s274 = smul.addr %s273, 2
        %s275 = smul.addr %s274, 4
        %s276 = scalar_lea.vmem %s0, %s275
        %v278 = vld [vmem:[%s276] sm:$0xff]
        %v280 = vcombine.high %v278, %v278
        %v282 = vpack.c.bf16 %v278, %v278
        %v283 = vpack.c.bf16 %v280, %v280
        %v284 = vld [vmem:[%s1] sm:$0x3]
        %v285 = vld [vmem:[%s2] sm:$0xf]
        %287 = vset.pattern.permute.xlu0 0
        %288 = vperm.xlu0 %287, %v285
        %v289 = vpop.permute.xlu0 %288
        %vm291 = vcmask 31744
        %v293 = vsel %vm291, %v284, 0
        %vm295 = vcmask 1041408
        %v297 = vsel %vm295, %v282, 0
        %v300 = vsel %vm295, %v283, 0
        %302 = vmatprep.subr.bf16.mxu0 0
        %303 = vmatpush1.bf16.msra.mxu0 0
        %304 = vmatprep.subr.bf16.mxu0 0
        %305 = vmatpush1.bf16.msra.mxu0 0
        %306 = vmatprep.subr.bf16.mxu0 0
        %307 = vmatpush1.bf16.msra.mxu0 0
        %308 = vmatprep.subr.bf16.mxu0 0
        %309 = vmatpush1.bf16.msra.mxu0 0
        %310 = vmatprep.subr.bf16.mxu0 0
        %311 = vmatpush1.bf16.msra.mxu0 0
        %312 = vmatprep.subr.bf16.mxu0 0
        %313 = vmatpush1.bf16.msra.mxu0 0
        %314 = vmatprep.subr.bf16.mxu0 0
        %315 = vmatpush1.bf16.msra.mxu0 0
        %316 = vmatprep.subr.bf16.mxu0 %v300
        %317 = vmatpush1.bf16.msra.mxu0 %v297
        %318 = vmatprep.subr.bf16.mxu0 0
        %319 = vmatpush2.bf16.msra.mxu0 0
        %320 = vmatprep.subr.bf16.mxu0 0
        %321 = vmatpush2.bf16.msra.mxu0 0
        %322 = vmatprep.subr.bf16.mxu0 0
        %323 = vmatpush2.bf16.msra.mxu0 0
        %324 = vmatprep.subr.bf16.mxu0 0
        %325 = vmatpush2.bf16.msra.mxu0 0
        %326 = vmatprep.subr.bf16.mxu0 0
        %327 = vmatpush2.bf16.msra.mxu0 0
        %328 = vmatprep.subr.bf16.mxu0 0
        %329 = vmatpush2.bf16.msra.mxu0 0
        %330 = vmatprep.subr.bf16.mxu0 0
        %331 = vmatpush2.bf16.msra.mxu0 0
        %332 = vmatprep.subr.bf16.mxu0 0
        %333 = vmatpush2.bf16.msra.mxu0 0
        %334 = vmatprep.mubr.bf16.mxu0 0
        %335 = vmatmul.mubr.bf16.gmra.mxu0 %v293
        %v336 = vpop.f32.mrf.mxu0
        %v337 = vadd.f32 %v289, %v336
        %v338 = vpop.f32.mrf.mxu0
        %v339 = vadd.f32 %v289, %v338
        %v340 = vpop.f32.mrf.mxu0
        %v341 = vpop.f32.mrf.mxu0
        %342 = vdwg.mxu0
        %v343 = vmax.f32 %v337, 0.0
        %v344 = vmax.f32 %v339, 0.0
        %v345 = vlaneseq
        %v346 = vand.u32 %v345, 127
        %v347 = vadd.s32 %v346, 128
        %v348 = vshra.s32 %v346, 4
        %v349 = vshra.s32 %v347, 4
        %v350 = vand.u32 %v346, 15
        %v351 = vand.u32 %v347, 15
        %vm352 = vcmp.ge.s32.totalorder %v348, 1
        %vm353 = vcmp.ge.s32.totalorder %v349, 1
        %vm354 = vcmp.lt.s32.totalorder %v348, 15
        %vm355 = vcmp.lt.s32.totalorder %v349, 15
        %vm356 = vcmp.ge.s32.totalorder %v350, 1
        %vm357 = vcmp.ge.s32.totalorder %v351, 1
        %vm358 = vcmp.lt.s32.totalorder %v350, 15
        %vm359 = vcmp.lt.s32.totalorder %v351, 15
        %361 = vrot.lane.b32.xlu0 %v344, 17
        %v362 = vpop.permute.xlu0 %361
        %365 = vrot.lane.b32.xlu0 %v343, 17
        %v366 = vpop.permute.xlu0 %365
        %vm367 = vcmask 138240
        %v368 = vsel %vm367, %v366, %v362
        %v371 = vsel %vm367, %v362, %v366
        %vm372 = vmand %vm352, %vm356
        %vm373 = vmand %vm353, %vm357
        %v374 = vsel %vm372, 1, 0
        %v375 = vsel %vm373, 1, 0
        %vm376 = vcmp.eq.s32.totalorder %v374, 1
        %vm377 = vcmp.eq.s32.totalorder %v375, 1
        %v378 = vsel %vm376, %v371, 0.0
        %v379 = vsel %vm377, %v368, 0.0
        %380 = vrot.lane.b32.xlu0 %v344, 16
        %v381 = vpop.permute.xlu0 %380
        %383 = vrot.lane.b32.xlu0 %v343, 16
        %v384 = vpop.permute.xlu0 %383
        %vm385 = vcmask 130048
        %v386 = vsel %vm385, %v384, %v381
        %v389 = vsel %vm385, %v381, %v384
        %v390 = vsel %vm352, 1, 0
        %v391 = vsel %vm353, 1, 0
        %vm392 = vcmp.eq.s32.totalorder %v390, 1
        %vm393 = vcmp.eq.s32.totalorder %v391, 1
        %v394 = vsel %vm392, %v389, 0.0
        %v395 = vsel %vm393, %v386, 0.0
        %396 = vrot.lane.b32.xlu0 %v344, 15
        %v397 = vpop.permute.xlu0 %396
        %399 = vrot.lane.b32.xlu0 %v343, 15
        %v400 = vpop.permute.xlu0 %399
        %vm401 = vcmask 121856
        %v402 = vsel %vm401, %v400, %v397
        %v405 = vsel %vm401, %v397, %v400
        %vm406 = vmand %vm352, %vm358
        %vm407 = vmand %vm353, %vm359
        %v408 = vsel %vm406, 1, 0
        %v409 = vsel %vm407, 1, 0
        %vm410 = vcmp.eq.s32.totalorder %v408, 1
        %vm411 = vcmp.eq.s32.totalorder %v409, 1
        %v412 = vsel %vm410, %v405, 0.0
        %v413 = vsel %vm411, %v402, 0.0
        %414 = vrot.lane.b32.xlu0 %v344, 1
        %v415 = vpop.permute.xlu0 %414
        %417 = vrot.lane.b32.xlu0 %v343, 1
        %v418 = vpop.permute.xlu0 %417
        %vm419 = vcmask 7168
        %v420 = vsel %vm419, %v418, %v415
        %v423 = vsel %vm419, %v415, %v418
        %v424 = vsel %vm356, 1, 0
        %v425 = vsel %vm357, 1, 0
        %vm426 = vcmp.eq.s32.totalorder %v424, 1
        %vm427 = vcmp.eq.s32.totalorder %v425, 1
        %v428 = vsel %vm426, %v423, 0.0
        %v429 = vsel %vm427, %v420, 0.0
        %430 = vrot.lane.b32.xlu0 %v343, 127
        %v431 = vpop.permute.xlu0 %430
        %432 = vrot.lane.b32.xlu0 %v344, 127
        %v433 = vpop.permute.xlu0 %432
        %vm434 = vcmask 1039360
        %v435 = vsel %vm434, %v431, %v433
        %v439 = vsel %vm434, %v433, %v431
        %v440 = vsel %vm358, 1, 0
        %v441 = vsel %vm359, 1, 0
        %vm442 = vcmp.eq.s32.totalorder %v440, 1
        %vm443 = vcmp.eq.s32.totalorder %v441, 1
        %v444 = vsel %vm442, %v435, 0.0
        %v445 = vsel %vm443, %v439, 0.0
        %446 = vrot.lane.b32.xlu0 %v343, 113
        %v447 = vpop.permute.xlu0 %446
        %448 = vrot.lane.b32.xlu0 %v344, 113
        %v449 = vpop.permute.xlu0 %448
        %vm450 = vcmask 924672
        %v451 = vsel %vm450, %v447, %v449
        %v455 = vsel %vm450, %v449, %v447
        %vm456 = vmand %vm354, %vm356
        %vm457 = vmand %vm355, %vm357
        %v458 = vsel %vm456, 1, 0
        %v459 = vsel %vm457, 1, 0
        %vm460 = vcmp.eq.s32.totalorder %v458, 1
        %vm461 = vcmp.eq.s32.totalorder %v459, 1
        %v462 = vsel %vm460, %v451, 0.0
        %v463 = vsel %vm461, %v455, 0.0
        %464 = vrot.lane.b32.xlu0 %v343, 112
        %v465 = vpop.permute.xlu0 %464
        %466 = vrot.lane.b32.xlu0 %v344, 112
        %v467 = vpop.permute.xlu0 %466
        %vm468 = vcmask 916480
        %v469 = vsel %vm468, %v465, %v467
        %v473 = vsel %vm468, %v467, %v465
        %v474 = vsel %vm354, 1, 0
        %v475 = vsel %vm355, 1, 0
        %vm476 = vcmp.eq.s32.totalorder %v474, 1
        %vm477 = vcmp.eq.s32.totalorder %v475, 1
        %v478 = vsel %vm476, %v469, 0.0
        %v479 = vsel %vm477, %v473, 0.0
        %480 = vrot.lane.b32.xlu0 %v343, 111
        %v481 = vpop.permute.xlu0 %480
        %482 = vrot.lane.b32.xlu0 %v344, 111
        %v483 = vpop.permute.xlu0 %482
        %vm484 = vcmask 908288
        %v485 = vsel %vm484, %v481, %v483
        %v489 = vsel %vm484, %v483, %v481
        %vm490 = vmand %vm354, %vm358
        %vm491 = vmand %vm355, %vm359
        %v492 = vsel %vm490, 1, 0
        %v493 = vsel %vm491, 1, 0
        %vm494 = vcmp.eq.s32.totalorder %v492, 1
        %vm495 = vcmp.eq.s32.totalorder %v493, 1
        %v496 = vsel %vm494, %v485, 0.0
        %v497 = vsel %vm495, %v489, 0.0
        %v500 = vrot.slane %v394, 4
        %v501 = vrot.slane %v395, 4
        %v506 = vrot.slane %v428, 4
        %v507 = vrot.slane %v429, 4
        %v512 = vrot.slane %v444, 4
        %v513 = vrot.slane %v445, 4
        %v518 = vrot.slane %v478, 4
        %v519 = vrot.slane %v479, 4
        %vm522 = vcmask 1043456
        %v523 = vsel %vm522, %v378, %v500
        %v524 = vsel %vm522, %v379, %v501
        %v525 = vsel %vm522, %v412, %v506
        %v526 = vsel %vm522, %v413, %v507
        %v527 = vsel %vm522, %v343, %v512
        %v528 = vsel %vm522, %v344, %v513
        %v529 = vsel %vm522, %v462, %v518
        %v530 = vsel %vm522, %v463, %v519
        %v531 = vpack.c.bf16 %v525, %v523
        %v532 = vpack.c.bf16 %v526, %v524
        %v533 = vpack.c.bf16 %v529, %v527
        %v534 = vpack.c.bf16 %v530, %v528
        %v535 = vpack.c.bf16 %v496, %v496
        %v536 = vpack.c.bf16 %v497, %v497
        %v537 = vld [vmem:[%s3] sm:$0x3]
        %v538 = vld [vmem:[%s4] sm:$0xf]
        %540 = vset.pattern.permute.xlu0 0
        %541 = vperm.xlu0 %540, %v538
        %v542 = vpop.permute.xlu0 %541
        %vm544 = vcmask 293888
        %v546 = vsel %vm544, %v537, 0
        %v549 = vsel %vm295, %v535, 0
        %v552 = vsel %vm295, %v536, 0
        %554 = vmatprep.subr.bf16.mxu0 0
        %555 = vmatpush1.bf16.msra.mxu0 0
        %556 = vmatprep.subr.bf16.mxu0 0
        %557 = vmatpush1.bf16.msra.mxu0 0
        %558 = vmatprep.subr.bf16.mxu0 0
        %559 = vmatpush1.bf16.msra.mxu0 0
        %560 = vmatprep.subr.bf16.mxu0 0
        %561 = vmatpush1.bf16.msra.mxu0 0
        %562 = vmatprep.subr.bf16.mxu0 0
        %563 = vmatpush1.bf16.msra.mxu0 0
        %564 = vmatprep.subr.bf16.mxu0 %v552
        %565 = vmatpush1.bf16.msra.mxu0 %v549
        %566 = vmatprep.subr.bf16.mxu0 %v534
        %567 = vmatpush1.bf16.msra.mxu0 %v533
        %568 = vmatprep.subr.bf16.mxu0 %v532
        %569 = vmatpush1.bf16.msra.mxu0 %v531
        %570 = vmatprep.subr.bf16.mxu0 0
        %571 = vmatpush2.bf16.msra.mxu0 0
        %572 = vmatprep.subr.bf16.mxu0 0
        %573 = vmatpush2.bf16.msra.mxu0 0
        %574 = vmatprep.subr.bf16.mxu0 0
        %575 = vmatpush2.bf16.msra.mxu0 0
        %576 = vmatprep.subr.bf16.mxu0 0
        %577 = vmatpush2.bf16.msra.mxu0 0
        %578 = vmatprep.subr.bf16.mxu0 0
        %579 = vmatpush2.bf16.msra.mxu0 0
        %580 = vmatprep.subr.bf16.mxu0 0
        %581 = vmatpush2.bf16.msra.mxu0 0
        %582 = vmatprep.subr.bf16.mxu0 0
        %583 = vmatpush2.bf16.msra.mxu0 0
        %584 = vmatprep.subr.bf16.mxu0 0
        %585 = vmatpush2.bf16.msra.mxu0 0
        %586 = vmatprep.mubr.bf16.mxu0 0
        %587 = vmatmul.mubr.bf16.gmra.mxu0 %v546
        %v588 = vpop.f32.mrf.mxu0
        %v589 = vadd.f32 %v542, %v588
        %v590 = vpop.f32.mrf.mxu0
        %v591 = vadd.f32 %v542, %v590
        %v592 = vpop.f32.mrf.mxu0
        %v593 = vpop.f32.mrf.mxu0
        %594 = vdwg.mxu0
        %v595 = vmax.f32 %v589, 0.0
        %v596 = vmax.f32 %v591, 0.0
        %v597 = vpack.c.bf16 %v595, %v595
        %v598 = vpack.c.bf16 %v596, %v596
        %v601 = vrot.slane %v282, 6
        %v602 = vrot.slane %v283, 6
        %v605 = vsel %vm295, %v597, %v601
        %v608 = vsel %vm295, %v598, %v602
        %v609 = vld [vmem:[%s5] sm:$0xf]
        %v610 = vld [vmem:[%s5 + $0x4] sm:$0xf]
        %v611 = vld [vmem:[%s6] sm:$0xff]
        %v612 = vld [vmem:[%s6 + $0x8] sm:$0xff]
        %614 = vset.pattern.permute.xlu0 0
        %615 = vperm.xlu0 %614, %v611
        %v616 = vpop.permute.xlu0 %615
        %619 = vset.pattern.permute.xlu0 0
        %620 = vperm.xlu0 %619, %v612
        %v621 = vpop.permute.xlu0 %620
        %v625 = vunpack.c.l.b16 %v609
        %v626 = vunpack.c.l.b16 %v610
        %v627 = vpack.c.b16 %v626, %v625
        %vm628 = vcmask 64512
        %v630 = vsel %vm628, %v627, 0
        %v632 = vsel %vm522, %v605, 0
        %v634 = vsel %vm522, %v608, 0
        %636 = vmatprep.subr.bf16.mxu0 0
        %637 = vmatpush1.bf16.msra.mxu0 0
        %638 = vmatprep.subr.bf16.mxu0 0
        %639 = vmatpush1.bf16.msra.mxu0 0
        %640 = vmatprep.subr.bf16.mxu0 0
        %641 = vmatpush1.bf16.msra.mxu0 0
        %642 = vmatprep.subr.bf16.mxu0 0
        %643 = vmatpush1.bf16.msra.mxu0 0
        %644 = vmatprep.subr.bf16.mxu0 0
        %645 = vmatpush1.bf16.msra.mxu0 0
        %646 = vmatprep.subr.bf16.mxu0 0
        %647 = vmatpush1.bf16.msra.mxu0 0
        %648 = vmatprep.subr.bf16.mxu0 0
        %649 = vmatpush1.bf16.msra.mxu0 0
        %650 = vmatprep.subr.bf16.mxu0 %v634
        %651 = vmatpush1.bf16.msra.mxu0 %v632
        %652 = vmatprep.subr.bf16.mxu0 0
        %653 = vmatpush2.bf16.msra.mxu0 0
        %654 = vmatprep.subr.bf16.mxu0 0
        %655 = vmatpush2.bf16.msra.mxu0 0
        %656 = vmatprep.subr.bf16.mxu0 0
        %657 = vmatpush2.bf16.msra.mxu0 0
        %658 = vmatprep.subr.bf16.mxu0 0
        %659 = vmatpush2.bf16.msra.mxu0 0
        %660 = vmatprep.subr.bf16.mxu0 0
        %661 = vmatpush2.bf16.msra.mxu0 0
        %662 = vmatprep.subr.bf16.mxu0 0
        %663 = vmatpush2.bf16.msra.mxu0 0
        %664 = vmatprep.subr.bf16.mxu0 0
        %665 = vmatpush2.bf16.msra.mxu0 0
        %666 = vmatprep.subr.bf16.mxu0 0
        %667 = vmatpush2.bf16.msra.mxu0 0
        %668 = vmatprep.mubr.bf16.mxu0 0
        %669 = vmatmul.mubr.bf16.gmra.mxu0 %v630
        %v670 = vpop.f32.mrf.mxu0
        %v671 = vadd.f32 %v616, %v670
        %v672 = vpop.f32.mrf.mxu0
        %v673 = vadd.f32 %v616, %v672
        %v674 = vpop.f32.mrf.mxu0
        %v675 = vadd.f32 %v621, %v674
        %v676 = vpop.f32.mrf.mxu0
        %v677 = vadd.f32 %v621, %v676
        %678 = vdwg.mxu0
        %v679 = vmax.f32 %v671, 0.0
        %v680 = vmax.f32 %v673, 0.0
        %v681 = vmax.f32 %v675, 0.0
        %v682 = vmax.f32 %v677, 0.0
        %683 = vst [vmem:[%s271] sm:$0xff] %v679
        %684 = vst [vmem:[%s271 + $0x8] sm:$0xff] %v680
        %685 = vst [vmem:[%s271 + $0x10] sm:$0xff] %v681
        %686 = vst [vmem:[%s271 + $0x18] sm:$0xff] %v682
        %s687 = sand.u32 %s181, 1
        %s688 = scalar_lea.sflag [#allocation3], %s687
        %s689 = sand.u32 %s181, 1
        %s690 = smul.addr %s689, 32
        %s691 = scalar_lea.vmem [#allocation2], %s690
        // Predicated region
        $region49: #{tpu_custom_call.1} parent=47 // pred_check
          %p692 = pneg %p191
        $region50: #{tpu_custom_call.1} parent=47 // pred_check_branch
          %694 = sbr.rel (%p692) target = $region52
        $region51: #{tpu_custom_call.1} parent=47 // pred_region
          %s696 = ssub.s32 512, 512
          %697 = vsyncadd %s688, %s696
          %s698 = smul.addr %s21, 4
          %s699 = smul.addr %s698, 128
          %s700 = scalar_lea.hbm %s7, %s699
          %s701 = sshll.u32 %s691, 4
          %s702 = int_to_ptr.vmem [resolvable:$true] %s701
          %707 = dma.vmem_to_hbm [thread:$0]  %s702, 512, %s700, %s688, 256, 256, 16
        $region52: #{tpu_custom_call.1} parent=47 // pred_fallthru
          _
      $region48: #{tpu_custom_call.1} parent=5 // pred_fallthru
        _
      %p708 = scmp.le.s32.totalorder 2, %s16
      // Predicated region
      $region53: #{tpu_custom_call.1} parent=5 // pred_check
        %p709 = pneg %p708
      $region54: #{tpu_custom_call.1} parent=5 // pred_check_branch
        %711 = sbr.rel (%p709) target = $region56
      $region55: #{tpu_custom_call.1} parent=5 // pred_region
        %s712 = ssub.s32 %s16, 2
        // Predicated region
        $region57: #{tpu_custom_call.1} parent=55 // pred_check
          %p713 = pneg %p197
        $region58: #{tpu_custom_call.1} parent=55 // pred_check_branch
          %715 = sbr.rel (%p713) target = $region60
        $region59: #{tpu_custom_call.1} parent=55 // pred_region
          %s716 = sand.u32 %s182, 1
          %s717 = scalar_lea.sflag [#allocation3], %s716
          %s718 = sand.u32 %s182, 1
          %s719 = smul.addr %s718, 32
          %s720 = scalar_lea.vmem [#allocation2], %s719
          %721 = dma.done %s717, 512
        $region60: #{tpu_custom_call.1} parent=55 // pred_fallthru
          _
      $region56: #{tpu_custom_call.1} parent=5 // pred_fallthru
        _
    $region6: #{tpu_custom_call.1} parent=1 // loop_footer
      %s20 = sadd.s32 1, %s16
    $region7: #{tpu_custom_call.1} parent=1 // loop_footer_branch
      %15 = sbr.rel target = $region3
    $region8: #{tpu_custom_call.1} parent=1 // loop_exit
      _
    %722 = vsyncpa [#allocation3], 1
    %s723 = scalar_lea.sflag [#allocation3], 1
    %724 = vsyncpa %s723, 1

</llo_original>
